<compile_context>
chip_gen: v7x
topology: tpu7x:2x2x1
jax: 0.10.0
libtpu: 0.0.40
codegen_flags: <defaults>
</compile_context>

<pallas_src>
import functools

import jax
import jax.numpy as jnp
from jax.experimental import pallas as pl
from jax.experimental.pallas import tpu as pltpu

NEG_SLOPE = 0.01   # nn.LeakyReLU() default negative_slope
EPS = 1e-5         # nn.InstanceNorm2d default eps
LANE = 128


def _round_up(x, m):
    return ((x + m - 1) // m) * m


def _conv_block_kernel(x_ref, w_ref, g_ref, b_ref, o_ref, *, n_spatial, w_out):
    """One batch sample: conv (2 fused matmuls) -> InstanceNorm2d -> LeakyReLU.

    x_ref : (1, (Ho+1)*Wo, 8*Cin)  bf16   space-to-depth'd padded input
    w_ref : (2, 8*Cin, Cp)         bf16   folded conv weights (row-tap groups)
    g_ref : (1, Cp) f32            InstanceNorm gamma (padded)
    b_ref : (1, Cp) f32            InstanceNorm beta  (padded)
    o_ref : (1, Ho*Wo, Cp) f32
    """
    P = n_spatial
    Wo = w_out

    # Conv as two accumulated MXU matmuls over contiguous row-shifted views
    # of the space-to-depth input (the shift replaces a materialized im2col).
    x0 = x_ref[0, :P, :]               # rows (i,   j)  -> tap group dh=0
    x1 = x_ref[0, Wo:Wo + P, :]        # rows (i+1, j)  -> tap group dh=1
    acc = jnp.dot(x0, w_ref[0], preferred_element_type=jnp.float32)
    acc = acc + jnp.dot(x1, w_ref[1], preferred_element_type=jnp.float32)

    # InstanceNorm2d: per-sample, per-channel stats over spatial axis, one pass.
    inv_p = 1.0 / P
    mean = jnp.sum(acc, axis=0, keepdims=True) * inv_p            # (1, Cp)
    msq = jnp.sum(acc * acc, axis=0, keepdims=True) * inv_p       # (1, Cp)
    var = jnp.maximum(msq - mean * mean, 0.0)
    scale = jax.lax.rsqrt(var + EPS) * g_ref[...]                 # (1, Cp)
    shift = b_ref[...] - mean * scale
    y = acc * scale + shift

    # LeakyReLU(0.01): since 0 < slope < 1, equals max(y, slope*y).
    o_ref[0] = jnp.maximum(y, NEG_SLOPE * y)


def conv2d_block_forward(x_nchw, weight_oihw, gamma, beta):
    """Conv2dBlock(n_in, n_out, 4, stride=2, padding=1, 'instancenorm', 'lrelu').

    x_nchw:      (N, Cin, H, W) float32, H and W even.
    weight_oihw: (Cout, Cin, 4, 4) float32  (PyTorch Conv2d layout, bias=False).
    gamma, beta: (Cout,) float32            (InstanceNorm2d affine params).
    Returns      (N, Cout, H//2, W//2) float32 (NCHW, as in PyTorch).
    """
    N, c_in, H, W = x_nchw.shape
    c_out, c_in_w, KH, KW = weight_oihw.shape
    assert (KH, KW) == (4, 4) and c_in_w == c_in
    assert H % 2 == 0 and W % 2 == 0, "k=4 / s=2 / p=1 path expects even H, W"
    Ho, Wo = H // 2, W // 2
    P = Ho * Wo
    K8 = 8 * c_in                      # (row-parity, 4 W-taps, Cin) folded
    Cp = _round_up(c_out, LANE)        # lane-dense output channels

    # --- XLA glue (cheap, ~2x input bytes): pad + stride-2 space-to-depth ---
    x = jnp.transpose(x_nchw, (0, 2, 3, 1)).astype(jnp.bfloat16)   # NHWC bf16
    xp = jnp.pad(x, ((0, 0), (1, 1), (1, 1), (0, 0)))              # (N,H+2,W+2,Cin)
    xh = xp.reshape(N, Ho + 1, 2, W + 2, c_in)                     # rows -> (a, rh)
    cols = [xh[:, :, :, kw:kw + 2 * Wo:2, :] for kw in range(4)]   # 4 W-taps
    xs = jnp.stack(cols, axis=4)                                   # (N,Ho+1,2,Wo,4,Cin)
    xs = jnp.transpose(xs, (0, 1, 3, 2, 4, 5))                     # (N,Ho+1,Wo,2,4,Cin)
    xs = xs.reshape(N, (Ho + 1) * Wo, K8)                          # flat row = a*Wo + j

    # Fold conv weights: w2[dh, (rh, kw, cin), cout] = w[2*dh + rh, kw, cin, cout]
    w_hwio = jnp.transpose(weight_oihw, (2, 3, 1, 0)).astype(jnp.float32)
    w2 = w_hwio.reshape(2, 2, 4, c_in, c_out).reshape(2, K8, c_out)
    w2 = jnp.pad(w2, ((0, 0), (0, 0), (0, Cp - c_out))).astype(jnp.bfloat16)
    g = jnp.pad(gamma.astype(jnp.float32), (0, Cp - c_out)).reshape(1, Cp)
    b = jnp.pad(beta.astype(jnp.float32), (0, Cp - c_out)).reshape(1, Cp)

    # The weight block never changes across the grid: single-buffer it when it
    # is large enough to threaten the scoped-VMEM limit (real dim=64 layers).
    w_spec_kwargs = {}
    if 2 * K8 * Cp * 2 > (8 << 20):            # bf16 bytes
        w_spec_kwargs["pipeline_mode"] = pl.Buffered(1)
    # TODO(synk): for very large K8 (deep dim=64 layers on v7x) also add a K
    # grid axis marked "arbitrary" with an f32 accumulator scratch instead of
    # resident full weights.

    kernel = functools.partial(_conv_block_kernel, n_spatial=P, w_out=Wo)
    out = pl.pallas_call(
        kernel,
        out_shape=jax.ShapeDtypeStruct((N, P, Cp), jnp.float32),
        grid=(N,),
        in_specs=[
            pl.BlockSpec((1, (Ho + 1) * Wo, K8), lambda n: (n, 0, 0)),
            pl.BlockSpec((2, K8, Cp), lambda n: (0, 0, 0), **w_spec_kwargs),
            pl.BlockSpec((1, Cp), lambda n: (0, 0)),
            pl.BlockSpec((1, Cp), lambda n: (0, 0)),
        ],
        out_specs=pl.BlockSpec((1, P, Cp), lambda n: (n, 0, 0)),
        compiler_params=pltpu.CompilerParams(
            dimension_semantics=("parallel",),
            vmem_limit_bytes=96 * 1024 * 1024),
    )(xs, w2, g, b)

    # (N, P, Cp) -> drop lane padding -> NCHW (PyTorch output layout).
    out = out.reshape(N, Ho, Wo, Cp)[:, :, :, :c_out]
    return jnp.transpose(out, (0, 3, 1, 2))


def _reference(x_nchw, weight_oihw, gamma, beta):
    """Plain-JAX reference (bf16 conv, f32 norm) for a sanity check."""
    x = jnp.transpose(x_nchw, (0, 2, 3, 1)).astype(jnp.bfloat16)
    w = jnp.transpose(weight_oihw, (2, 3, 1, 0)).astype(jnp.bfloat16)
    y = jax.lax.conv_general_dilated(
        x, w, window_strides=(2, 2), padding=((1, 1), (1, 1)),
        dimension_numbers=("NHWC", "HWIO", "NHWC"),
        preferred_element_type=jnp.float32)
    mean = jnp.mean(y, axis=(1, 2), keepdims=True)
    var = jnp.mean(jnp.square(y - mean), axis=(1, 2), keepdims=True)
    yn = (y - mean) * jax.lax.rsqrt(var + EPS)
    yn = yn * gamma.reshape(1, 1, 1, -1) + beta.reshape(1, 1, 1, -1)
    yn = jnp.where(yn >= 0, yn, NEG_SLOPE * yn)
    return jnp.transpose(yn, (0, 3, 1, 2))


if __name__ == "__main__":
    # Small config: batch=2, n_in=4, 16x16 images, n_out=32 (k=4, s=2, p=1).
    N, c_in, H, W = 2, 4, 16, 16
    c_out = 32

    key = jax.random.PRNGKey(0)
    k0, k1, k2, k3 = jax.random.split(key, 4)
    x = jax.random.normal(k0, (N, c_in, H, W), jnp.float32)
    w = jax.random.normal(k1, (c_out, c_in, 4, 4), jnp.float32) * (1.0 / (16 * c_in)) ** 0.5
    gamma = 1.0 + 0.1 * jax.random.normal(k2, (c_out,), jnp.float32)
    beta = 0.1 * jax.random.normal(k3, (c_out,), jnp.float32)

    out = jax.jit(conv2d_block_forward)(x, w, gamma, beta)
    out = jax.block_until_ready(out)
    assert out.shape == (N, c_out, H // 2, W // 2) and out.dtype == jnp.float32
    assert bool(jnp.all(jnp.isfinite(out)))

    ref = jax.block_until_ready(_reference(x, w, gamma, beta))
    max_err = float(jnp.max(jnp.abs(out - ref)))
    assert max_err < 5e-2, f"mismatch vs reference: max abs err {max_err}"

    print("KERNEL_OK")
</pallas_src>

<mosaic_0001>
module attributes {stable_mosaic.version = 11 : i64} {
  func.func @_conv_block_kernel(%arg0: i32, %arg1: memref<1x72x32xbf16, #tpu.memory_space<vmem>>, %arg2: memref<2x32x128xbf16, #tpu.memory_space<vmem>>, %arg3: memref<1x128xf32, #tpu.memory_space<vmem>>, %arg4: memref<1x128xf32, #tpu.memory_space<vmem>>, %arg5: memref<1x64x128xf32, #tpu.memory_space<vmem>>) attributes {dimension_semantics = [#tpu.dimension_semantics<parallel>], iteration_bounds = array<i64: 2>, scalar_prefetch = 0 : i64, scratch_operands = 0 : i64, tpu.core_type = #tpu.core_type<tc>, window_params = [{transform_indices = @transform_0, window_bounds = array<i64: 1, 72, 32>}, {pipeline_mode = #tpu.pipeline_mode<synchronous>, transform_indices = @transform_1, window_bounds = array<i64: 2, 32, 128>}, {pipeline_mode = #tpu.pipeline_mode<synchronous>, transform_indices = @transform_2, window_bounds = array<i64: 1, 128>}, {pipeline_mode = #tpu.pipeline_mode<synchronous>, transform_indices = @transform_3, window_bounds = array<i64: 1, 128>}, {transform_indices = @transform_4, window_bounds = array<i64: 1, 64, 128>}]} {
    %c0 = arith.constant 0 : index
    %c0_0 = arith.constant 0 : index
    %c0_1 = arith.constant 0 : index
    %0 = vector.load %arg1[%c0, %c0_0, %c0_1] : memref<1x72x32xbf16, #tpu.memory_space<vmem>>, vector<1x64x32xbf16>
    %1 = vector.shape_cast %0 : vector<1x64x32xbf16> to vector<64x32xbf16>
    %c0_2 = arith.constant 0 : index
    %c8 = arith.constant 8 : index
    %c0_3 = arith.constant 0 : index
    %2 = vector.load %arg1[%c0_2, %c8, %c0_3] : memref<1x72x32xbf16, #tpu.memory_space<vmem>>, vector<1x64x32xbf16>
    %3 = vector.shape_cast %2 : vector<1x64x32xbf16> to vector<64x32xbf16>
    %c0_4 = arith.constant 0 : index
    %c0_5 = arith.constant 0 : index
    %c0_6 = arith.constant 0 : index
    %4 = vector.load %arg2[%c0_4, %c0_5, %c0_6] : memref<2x32x128xbf16, #tpu.memory_space<vmem>>, vector<1x32x128xbf16>
    %5 = vector.shape_cast %4 : vector<1x32x128xbf16> to vector<32x128xbf16>
    %cst = arith.constant dense<0.000000e+00> : vector<64x128xf32>
    %6 = tpu.matmul %1, %5, %cst {dimension_numbers = #tpu.dot_dimension_numbers<[1], [0], [0], [1], [0, 0, 1, 1], [], []>} : vector<64x32xbf16>, vector<32x128xbf16>, vector<64x128xf32> -> vector<64x128xf32>
    %c1 = arith.constant 1 : index
    %c0_7 = arith.constant 0 : index
    %c0_8 = arith.constant 0 : index
    %7 = vector.load %arg2[%c1, %c0_7, %c0_8] : memref<2x32x128xbf16, #tpu.memory_space<vmem>>, vector<1x32x128xbf16>
    %8 = vector.shape_cast %7 : vector<1x32x128xbf16> to vector<32x128xbf16>
    %cst_9 = arith.constant dense<0.000000e+00> : vector<64x128xf32>
    %9 = tpu.matmul %3, %8, %cst_9 {dimension_numbers = #tpu.dot_dimension_numbers<[1], [0], [0], [1], [0, 0, 1, 1], [], []>} : vector<64x32xbf16>, vector<32x128xbf16>, vector<64x128xf32> -> vector<64x128xf32>
    %10 = arith.addf %6, %9 : vector<64x128xf32>
    %cst_10 = arith.constant dense<0.000000e+00> : vector<128xf32>
    %11 = vector.multi_reduction <add>, %10, %cst_10 [0] : vector<64x128xf32> to vector<128xf32>
    %12 = vector.shape_cast %11 : vector<128xf32> to vector<1x128xf32>
    %cst_11 = arith.constant 1.562500e-02 : f32
    %13 = vector.broadcast %cst_11 : f32 to vector<1x128xf32>
    %14 = arith.mulf %12, %13 : vector<1x128xf32>
    %15 = arith.mulf %10, %10 : vector<64x128xf32>
    %cst_12 = arith.constant dense<0.000000e+00> : vector<128xf32>
    %16 = vector.multi_reduction <add>, %15, %cst_12 [0] : vector<64x128xf32> to vector<128xf32>
    %17 = vector.shape_cast %16 : vector<128xf32> to vector<1x128xf32>
    %cst_13 = arith.constant 1.562500e-02 : f32
    %18 = vector.broadcast %cst_13 : f32 to vector<1x128xf32>
    %19 = arith.mulf %17, %18 : vector<1x128xf32>
    %20 = arith.mulf %14, %14 : vector<1x128xf32>
    %21 = arith.subf %19, %20 : vector<1x128xf32>
    %cst_14 = arith.constant 0.000000e+00 : f32
    %22 = vector.broadcast %cst_14 : f32 to vector<1x128xf32>
    %23 = arith.maximumf %21, %22 : vector<1x128xf32>
    %cst_15 = arith.constant 9.99999974E-6 : f32
    %24 = vector.broadcast %cst_15 : f32 to vector<1x128xf32>
    %25 = arith.addf %23, %24 : vector<1x128xf32>
    %26 = math.rsqrt %25 : vector<1x128xf32>
    %c0_16 = arith.constant 0 : index
    %c0_17 = arith.constant 0 : index
    %27 = vector.load %arg3[%c0_16, %c0_17] : memref<1x128xf32, #tpu.memory_space<vmem>>, vector<1x128xf32>
    %28 = arith.mulf %26, %27 : vector<1x128xf32>
    %c0_18 = arith.constant 0 : index
    %c0_19 = arith.constant 0 : index
    %29 = vector.load %arg4[%c0_18, %c0_19] : memref<1x128xf32, #tpu.memory_space<vmem>>, vector<1x128xf32>
    %30 = arith.mulf %14, %28 : vector<1x128xf32>
    %31 = arith.subf %29, %30 : vector<1x128xf32>
    %32 = vector.broadcast %28 : vector<1x128xf32> to vector<64x128xf32>
    %33 = arith.mulf %10, %32 : vector<64x128xf32>
    %34 = vector.broadcast %31 : vector<1x128xf32> to vector<64x128xf32>
    %35 = arith.addf %33, %34 : vector<64x128xf32>
    %cst_20 = arith.constant 0.00999999977 : f32
    %36 = vector.broadcast %cst_20 : f32 to vector<64x128xf32>
    %37 = arith.mulf %36, %35 : vector<64x128xf32>
    %38 = arith.maximumf %35, %37 : vector<64x128xf32>
    %c0_21 = arith.constant 0 : index
    %c0_22 = arith.constant 0 : index
    %c0_23 = arith.constant 0 : index
    %39 = vector.load %arg5[%c0_21, %c0_22, %c0_23] : memref<1x64x128xf32, #tpu.memory_space<vmem>>, vector<1x64x128xf32>
    %40 = vector.shape_cast %39 : vector<1x64x128xf32> to vector<64x128xf32>
    %41 = vector.shape_cast %38 : vector<64x128xf32> to vector<1x64x128xf32>
    tpu.vector_store %arg5[%c0_21, %c0_22, %c0_23], %41 {strides = array<i32>} : memref<1x64x128xf32, #tpu.memory_space<vmem>>, vector<1x64x128xf32>,
    return
  }
  func.func @transform_0(%arg0: i32) -> (i32, i32, i32) {
    %c0_i32 = arith.constant 0 : i32
    %c0_i32_0 = arith.constant 0 : i32
    %c0_i32_1 = arith.constant 0 : i32
    return %arg0, %c0_i32, %c0_i32_0 : i32, i32, i32
  }
  func.func @transform_1(%arg0: i32) -> (i32, i32, i32) {
    %c0_i32 = arith.constant 0 : i32
    %c0_i32_0 = arith.constant 0 : i32
    %c0_i32_1 = arith.constant 0 : i32
    %c0_i32_2 = arith.constant 0 : i32
    return %c0_i32, %c0_i32_0, %c0_i32_1 : i32, i32, i32
  }
  func.func @transform_2(%arg0: i32) -> (i32, i32) {
    %c0_i32 = arith.constant 0 : i32
    %c0_i32_0 = arith.constant 0 : i32
    %c0_i32_1 = arith.constant 0 : i32
    return %c0_i32, %c0_i32_0 : i32, i32
  }
  func.func @transform_3(%arg0: i32) -> (i32, i32) {
    %c0_i32 = arith.constant 0 : i32
    %c0_i32_0 = arith.constant 0 : i32
    %c0_i32_1 = arith.constant 0 : i32
    return %c0_i32, %c0_i32_0 : i32, i32
  }
  func.func @transform_4(%arg0: i32) -> (i32, i32, i32) {
    %c0_i32 = arith.constant 0 : i32
    %c0_i32_0 = arith.constant 0 : i32
    %c0_i32_1 = arith.constant 0 : i32
    return %arg0, %c0_i32, %c0_i32_0 : i32, i32, i32
  }
}

</mosaic_0001>

<llo_original>
// kernel: conv2d_block_forward.1
$region0: #{conv2d_block_forward.1}
  #allocation0 [shape = 'u32[]', space=smem, size = 0x4, offset = 0x4, fixed_abs, tag = 'smem constant byte address 0x4 - core index']
  #allocation1 [shape = 'u32[144,128]{1,0:T(1,128)}', space=vmem, size = 0x12000, scoped, tag = 'internal scratch']
  %s0 = inlined_call_operand.hbm [shape: bf16[2,72,32], index: 0, kind: input, shape index: {}]
  %s1 = inlined_call_operand.hbm [shape: bf16[2,32,128], index: 1, kind: input, shape index: {}]
  %s2 = inlined_call_operand.hbm [shape: f32[1,128], index: 2, kind: input, shape index: {}]
  %s3 = inlined_call_operand.hbm [shape: f32[1,128], index: 3, kind: input, shape index: {}]
  %s4 = inlined_call_operand.hbm [shape: f32[2,64,128], index: 4, kind: output, shape index: {}]
  %s5 = sld [smem:[#allocation0]]
  $region65: #{conv2d_block_forward.1} parent=0
    _
  %s7 = ssub.s32 1, %s5
  %s8 = scalar_select 0, %s7, %s5
  $region1: #{conv2d_block_forward.1} parent=0
    #allocation2 [shape = 'u8[36864]{0}', space=vmem, size = 0x9000, scoped, tag = 'input window, operand 0']
    #allocation3 [shape = 's32[2]{0}', space=sflag, size = 0x8, scoped, tag = 'scoped memory for conv2d_block_forward.1']
    #allocation4 [shape = 's32[2]{0}', space=sflag, size = 0x8, scoped, tag = 'scoped memory for conv2d_block_forward.1']
    #allocation5 [shape = 'u8[16384]{0}', space=vmem, size = 0x4000, scoped, tag = 'input window, operand 1, single buffered']
    #allocation6 [shape = 's32[1]{0}', space=sflag, size = 0x4, scoped, tag = 'scoped memory for conv2d_block_forward.1']
    #allocation7 [shape = 'u8[512]{0}', space=vmem, size = 0x400, scoped, tag = 'input window, operand 2, single buffered']
    #allocation8 [shape = 'u8[512]{0}', space=vmem, size = 0x400, scoped, tag = 'input window, operand 3, single buffered']
    #allocation9 [shape = 's32[1]{0}', space=sflag, size = 0x4, scoped, tag = 'scoped memory for conv2d_block_forward.1']
    #allocation10 [shape = 'u8[65536]{0}', space=vmem, size = 0x10000, scoped, tag = 'output window, operand 0']
    %9 = vsyncpa [#allocation3], 0
    %s10 = scalar_lea.sflag [#allocation3], 1
    %11 = vsyncpa %s10, 0
    %12 = vsyncpa [#allocation6], 0
    %13 = vsyncpa [#allocation9], 0
    %14 = vsyncpa [#allocation4], 0
    %s15 = scalar_lea.sflag [#allocation4], 1
    %16 = vsyncpa %s15, 0
    loop: start=0, step=1, limit=4
    $region2: #{conv2d_block_forward.1} parent=1 // loop_pre_header
      _
    $region3: #{conv2d_block_forward.1} parent=1 // loop_header
      %s18 = sphi 0, %s22
      %p19 = scmp.ge.s32.totalorder %s18, 4
      %s28 = sphi 0, %s30
      %s31 = sphi 0, %s28
      %s32 = sphi 0, %s31
      %s48 = sphi 0, %s32
      %s52 = sphi 0, %s52
      %s54 = sphi 0, %s52
      %s55 = sphi 0, %s54
      %s69 = sphi 0, %s55
      %s73 = sphi 0, %s73
      %s75 = sphi 0, %s73
      %s76 = sphi 0, %s75
      %s90 = sphi 0, %s76
      %s94 = sphi 0, %s94
      %s96 = sphi 0, %s94
      %s97 = sphi 0, %s96
      %s111 = sphi 0, %s97
      %s117 = sphi 0, %s119
      %s120 = sphi 0, %s117
      %s121 = sphi 0, %s120
      %s137 = sphi 0, %s121
    $region4: #{conv2d_block_forward.1} parent=1 // loop_header_branch
      %21 = sbr.rel (%p19) target = $region8
    $region5: #{conv2d_block_forward.1} parent=1 // loop_body
      %s23 = ssub.s32 %s18, 1
      %s24 = ssub.s32 %s18, 2
      %s25 = sadd.s32 %s18, 1
      %s26 = ssub.s32 %s18, %s25
      %p27 = scmp.eq.s32.totalorder %s26, 0
      %s29 = sadd.s32 %s28, 1
      %s30 = scalar_select %p27, %s28, %s29
      %p33 = pneg %p27
      %p34 = scmp.eq.s32.totalorder %s18, 1
      %p35 = por %p33, %p34
      %p36 = scmp.ne.s32.totalorder %s28, %s31
      %p37 = scmp.eq.s32.totalorder %s18, 0
      %p38 = por %p36, %p37
      %p39 = scmp.ne.s32.totalorder %s28, %s31
      %p40 = scmp.eq.s32.totalorder %s23, 1
      %p41 = por %p39, %p40
      %p42 = scmp.ne.s32.totalorder %s31, %s32
      %p43 = scmp.eq.s32.totalorder %s23, 0
      %p44 = por %p42, %p43
      %p45 = scmp.ne.s32.totalorder %s31, %s32
      %p46 = scmp.eq.s32.totalorder %s24, 1
      %p47 = por %p45, %p46
      %p49 = scmp.ne.s32.totalorder %s32, %s48
      %p50 = scmp.eq.s32.totalorder %s24, 0
      %p51 = por %p49, %p50
      %s53 = sadd.s32 %s52, 1
      %p56 = scmp.eq.s32.totalorder %s18, 1
      %p57 = scmp.ne.s32.totalorder %s52, %s54
      %p58 = scmp.eq.s32.totalorder %s18, 0
      %p59 = por %p57, %p58
      %p60 = scmp.ne.s32.totalorder %s52, %s54
      %p61 = scmp.eq.s32.totalorder %s23, 1
      %p62 = por %p60, %p61
      %p63 = scmp.ne.s32.totalorder %s54, %s55
      %p64 = scmp.eq.s32.totalorder %s23, 0
      %p65 = por %p63, %p64
      %p66 = scmp.ne.s32.totalorder %s54, %s55
      %p67 = scmp.eq.s32.totalorder %s24, 1
      %p68 = por %p66, %p67
      %p70 = scmp.ne.s32.totalorder %s55, %s69
      %p71 = scmp.eq.s32.totalorder %s24, 0
      %p72 = por %p70, %p71
      %s74 = sadd.s32 %s73, 1
      %p77 = scmp.eq.s32.totalorder %s18, 1
      %p78 = scmp.ne.s32.totalorder %s73, %s75
      %p79 = scmp.eq.s32.totalorder %s18, 0
      %p80 = por %p78, %p79
      %p81 = scmp.ne.s32.totalorder %s73, %s75
      %p82 = scmp.eq.s32.totalorder %s23, 1
      %p83 = por %p81, %p82
      %p84 = scmp.ne.s32.totalorder %s75, %s76
      %p85 = scmp.eq.s32.totalorder %s23, 0
      %p86 = por %p84, %p85
      %p87 = scmp.ne.s32.totalorder %s75, %s76
      %p88 = scmp.eq.s32.totalorder %s24, 1
      %p89 = por %p87, %p88
      %p91 = scmp.ne.s32.totalorder %s76, %s90
      %p92 = scmp.eq.s32.totalorder %s24, 0
      %p93 = por %p91, %p92
      %s95 = sadd.s32 %s94, 1
      %p98 = scmp.eq.s32.totalorder %s18, 1
      %p99 = scmp.ne.s32.totalorder %s94, %s96
      %p100 = scmp.eq.s32.totalorder %s18, 0
      %p101 = por %p99, %p100
      %p102 = scmp.ne.s32.totalorder %s94, %s96
      %p103 = scmp.eq.s32.totalorder %s23, 1
      %p104 = por %p102, %p103
      %p105 = scmp.ne.s32.totalorder %s96, %s97
      %p106 = scmp.eq.s32.totalorder %s23, 0
      %p107 = por %p105, %p106
      %p108 = scmp.ne.s32.totalorder %s96, %s97
      %p109 = scmp.eq.s32.totalorder %s24, 1
      %p110 = por %p108, %p109
      %p112 = scmp.ne.s32.totalorder %s97, %s111
      %p113 = scmp.eq.s32.totalorder %s24, 0
      %p114 = por %p112, %p113
      %s115 = ssub.s32 %s18, %s25
      %p116 = scmp.eq.s32.totalorder %s115, 0
      %s118 = sadd.s32 %s117, 1
      %s119 = scalar_select %p116, %s117, %s118
      %p122 = pneg %p116
      %p123 = scmp.eq.s32.totalorder %s18, 1
      %p124 = por %p122, %p123
      %p125 = scmp.ne.s32.totalorder %s117, %s120
      %p126 = scmp.eq.s32.totalorder %s18, 0
      %p127 = por %p125, %p126
      %p128 = scmp.ne.s32.totalorder %s117, %s120
      %p129 = scmp.eq.s32.totalorder %s23, 1
      %p130 = por %p128, %p129
      %p131 = scmp.ne.s32.totalorder %s120, %s121
      %p132 = scmp.eq.s32.totalorder %s23, 0
      %p133 = por %p131, %p132
      %p134 = scmp.ne.s32.totalorder %s120, %s121
      %p135 = scmp.eq.s32.totalorder %s24, 1
      %p136 = por %p134, %p135
      %p138 = scmp.ne.s32.totalorder %s121, %s137
      %p139 = scmp.eq.s32.totalorder %s24, 0
      %p140 = por %p138, %p139
      %p141 = scmp.le.s32.totalorder 1, %s18
      %p142 = scmp.lt.s32.totalorder %s18, 3
      %p143 = pnand %p141, %p142
      %p144 = pneg %p143
      // Predicated region
      $region9: #{conv2d_block_forward.1} parent=5 // pred_check
        _
      $region10: #{conv2d_block_forward.1} parent=5 // pred_check_branch
        %146 = sbr.rel (%p143) target = $region12
      $region11: #{conv2d_block_forward.1} parent=5 // pred_region
        %s147 = ssub.s32 %s18, 1
        // Predicated region
        $region13: #{conv2d_block_forward.1} parent=11 // pred_check
          %p148 = pneg %p65
        $region14: #{conv2d_block_forward.1} parent=11 // pred_check_branch
          %150 = sbr.rel (%p148) target = $region16
        $region15: #{conv2d_block_forward.1} parent=11 // pred_region
          %s152 = ssub.s32 512, 512
          %153 = vsyncadd [#allocation6], %s152
          %s154 = sshll.u32 [#allocation5], 4
          %s155 = int_to_ptr.vmem [resolvable:$true] %s154
          %160 = dma.hbm_to_vmem [thread:$0]  %s1, 512, %s155, [#allocation6], 64, 64, 4
        $region16: #{conv2d_block_forward.1} parent=11 // pred_fallthru
          _
        // Predicated region
        $region17: #{conv2d_block_forward.1} parent=11 // pred_check
          %p161 = pneg %p86
        $region18: #{conv2d_block_forward.1} parent=11 // pred_check_branch
          %163 = sbr.rel (%p161) target = $region20
        $region19: #{conv2d_block_forward.1} parent=11 // pred_region
          %s165 = ssub.s32 16, 16
          %166 = vsyncadd [#allocation6], %s165
          %s168 = sshll.u32 [#allocation7], 4
          %s169 = int_to_ptr.vmem [resolvable:$true] %s168
          %171 = dma.hbm_to_vmem [thread:$0]  %s2, 16, %s169, [#allocation6]
        $region20: #{conv2d_block_forward.1} parent=11 // pred_fallthru
          _
        // Predicated region
        $region21: #{conv2d_block_forward.1} parent=11 // pred_check
          %p172 = pneg %p107
        $region22: #{conv2d_block_forward.1} parent=11 // pred_check_branch
          %174 = sbr.rel (%p172) target = $region24
        $region23: #{conv2d_block_forward.1} parent=11 // pred_region
          %s176 = ssub.s32 16, 16
          %177 = vsyncadd [#allocation9], %s176
          %s179 = sshll.u32 [#allocation8], 4
          %s180 = int_to_ptr.vmem [resolvable:$true] %s179
          %182 = dma.hbm_to_vmem [thread:$0]  %s3, 16, %s180, [#allocation9]
        $region24: #{conv2d_block_forward.1} parent=11 // pred_fallthru
          _
      $region12: #{conv2d_block_forward.1} parent=5 // pred_fallthru
        _
      %p183 = scmp.lt.s32.totalorder %s18, 2
      // Predicated region
      $region25: #{conv2d_block_forward.1} parent=5 // pred_check
        %p184 = pneg %p183
      $region26: #{conv2d_block_forward.1} parent=5 // pred_check_branch
        %186 = sbr.rel (%p184) target = $region28
      $region27: #{conv2d_block_forward.1} parent=5 // pred_region
        // Predicated region
        $region29: #{conv2d_block_forward.1} parent=27 // pred_check
          %p187 = pneg %p38
        $region30: #{conv2d_block_forward.1} parent=27 // pred_check_branch
          %189 = sbr.rel (%p187) target = $region32
        $region31: #{conv2d_block_forward.1} parent=27 // pred_region
          %s190 = sand.u32 %s28, 1
          %s191 = scalar_lea.sflag [#allocation3], %s190
          %s192 = sand.u32 %s28, 1
          %s193 = smul.addr %s192, 36
          %s194 = scalar_lea.vmem [#allocation2], %s193
          %s196 = ssub.s32 576, 576
          %197 = vsyncadd %s191, %s196
          %s198 = smul.addr %s18, 9
          %s199 = smul.addr %s198, 64
          %s200 = scalar_lea.hbm %s0, %s199
          %s201 = sshll.u32 %s194, 4
          %s202 = int_to_ptr.vmem [resolvable:$true] %s201
          %207 = dma.hbm_to_vmem [thread:$0]  %s200, 576, %s202, %s191, 64, 64, 4
        $region32: #{conv2d_block_forward.1} parent=27 // pred_fallthru
          _
      $region28: #{conv2d_block_forward.1} parent=5 // pred_fallthru
        _
      %p208 = scmp.le.s32.totalorder 1, %s18
      %p209 = scmp.lt.s32.totalorder %s18, 3
      %p210 = pnand %p208, %p209
      %p211 = pneg %p210
      // Predicated region
      $region33: #{conv2d_block_forward.1} parent=5 // pred_check
        _
      $region34: #{conv2d_block_forward.1} parent=5 // pred_check_branch
        %213 = sbr.rel (%p210) target = $region36
      $region35: #{conv2d_block_forward.1} parent=5 // pred_region
        %s214 = ssub.s32 %s18, 1
        %s215 = sand.u32 %s31, 1
        %s216 = scalar_lea.sflag [#allocation3], %s215
        %s217 = sand.u32 %s31, 1
        %s218 = smul.addr %s217, 36
        %s219 = scalar_lea.vmem [#allocation2], %s218
        // Predicated region
        $region37: #{conv2d_block_forward.1} parent=35 // pred_check
          %p220 = pneg %p44
        $region38: #{conv2d_block_forward.1} parent=35 // pred_check_branch
          %222 = sbr.rel (%p220) target = $region40
        $region39: #{conv2d_block_forward.1} parent=35 // pred_region
          %223 = dma.done %s216, 576
        $region40: #{conv2d_block_forward.1} parent=35 // pred_fallthru
          _
        // Predicated region
        $region41: #{conv2d_block_forward.1} parent=35 // pred_check
          %p224 = pneg %p65
        $region42: #{conv2d_block_forward.1} parent=35 // pred_check_branch
          %226 = sbr.rel (%p224) target = $region44
        $region43: #{conv2d_block_forward.1} parent=35 // pred_region
          %227 = dma.done [#allocation6], 512
        $region44: #{conv2d_block_forward.1} parent=35 // pred_fallthru
          _
        // Predicated region
        $region45: #{conv2d_block_forward.1} parent=35 // pred_check
          %p228 = pneg %p86
        $region46: #{conv2d_block_forward.1} parent=35 // pred_check_branch
          %230 = sbr.rel (%p228) target = $region48
        $region47: #{conv2d_block_forward.1} parent=35 // pred_region
          %231 = dma.done [#allocation6], 16
        $region48: #{conv2d_block_forward.1} parent=35 // pred_fallthru
          _
        // Predicated region
        $region49: #{conv2d_block_forward.1} parent=35 // pred_check
          %p232 = pneg %p107
        $region50: #{conv2d_block_forward.1} parent=35 // pred_check_branch
          %234 = sbr.rel (%p232) target = $region52
        $region51: #{conv2d_block_forward.1} parent=35 // pred_region
          %235 = dma.done [#allocation9], 16
        $region52: #{conv2d_block_forward.1} parent=35 // pred_fallthru
          _
        %s236 = sand.u32 %s31, 1
        %s237 = scalar_lea.sflag [#allocation3], %s236
        %s238 = sand.u32 %s31, 1
        %s239 = smul.addr %s238, 36
        %s240 = scalar_lea.vmem [#allocation2], %s239
        %p241 = pneg %p44
        %p242 = pneg %p41
        %p243 = pneg %p65
        %p244 = pneg %p62
        %p245 = pneg %p86
        %p246 = pneg %p83
        %p247 = pneg %p107
        %p248 = pneg %p104
        %p249 = pneg %p133
        %p250 = pneg %p130
        %s251 = sand.u32 %s120, 1
        %s252 = scalar_lea.sflag [#allocation4], %s251
        %s253 = sand.u32 %s120, 1
        %s254 = smul.addr %s253, 64
        %s255 = scalar_lea.vmem [#allocation10], %s254
        %v257 = vld [vmem:[%s219] sm:$0xf]
        %v258 = vld [vmem:[%s219 + $0x4] sm:$0xf]
        %v259 = vld [vmem:[%s219 + $0x8] sm:$0xf]
        %v260 = vld [vmem:[%s219 + $0xc] sm:$0xf]
        %v261 = vld [vmem:[%s219 + $0x10] sm:$0xf]
        %v262 = vld [vmem:[%s219 + $0x14] sm:$0xf]
        %v263 = vld [vmem:[%s219 + $0x18] sm:$0xf]
        %v264 = vld [vmem:[%s219 + $0x1c] sm:$0xf]
        %v265 = vld [vmem:[%s219 + $0x20] sm:$0xf]
        %v266 = vld [vmem:[#allocation5] sm:$0xf]
        %v267 = vld [vmem:[#allocation5 + $0x4] sm:$0xf]
        %v268 = vld [vmem:[#allocation5 + $0x8] sm:$0xf]
        %v269 = vld [vmem:[#allocation5 + $0xc] sm:$0xf]
        %s270 = scalar_lea.vmem [#allocation5], 16
        %v271 = vld [vmem:[%s270] sm:$0xf]
        %v272 = vld [vmem:[%s270 + $0x4] sm:$0xf]
        %v273 = vld [vmem:[%s270 + $0x8] sm:$0xf]
        %v274 = vld [vmem:[%s270 + $0xc] sm:$0xf]
        %v283 = vunpack.c.l.b16 %v258
        %v284 = vunpack.c.l.b16 %v259
        %v285 = vunpack.c.l.b16 %v260
        %v286 = vunpack.c.l.b16 %v261
        %v287 = vunpack.c.l.b16 %v262
        %v288 = vunpack.c.l.b16 %v263
        %v289 = vunpack.c.l.b16 %v264
        %v290 = vunpack.c.l.b16 %v265
        %v291 = vpack.c.b16 %v284, %v283
        %v292 = vpack.c.b16 %v286, %v285
        %v293 = vpack.c.b16 %v288, %v287
        %v294 = vpack.c.b16 %v290, %v289
        %v299 = vunpack.c.l.b16 %v271
        %v300 = vunpack.c.l.b16 %v272
        %v301 = vunpack.c.l.b16 %v273
        %v302 = vunpack.c.l.b16 %v274
        %v303 = vpack.c.b16 %v300, %v299
        %v304 = vpack.c.b16 %v302, %v301
        %vm307 = vcmask 261120
        %v309 = vsel %vm307, %v291, 0
        %v312 = vsel %vm307, %v292, 0
        %v315 = vsel %vm307, %v293, 0
        %v318 = vsel %vm307, %v294, 0
        %320 = vmatprep.subr.bf16.mxu0 0
        %321 = vmatpush1.bf16.msra.mxu0 %v303
        %322 = vmatprep.subr.bf16.mxu0 0
        %323 = vmatpush1.bf16.msra.mxu0 %v304
        %324 = vmatprep.subr.bf16.mxu0 0
        %325 = vmatpush1.bf16.msra.mxu0 0
        %326 = vmatprep.subr.bf16.mxu0 0
        %327 = vmatpush1.bf16.msra.mxu0 0
        %328 = vmatprep.subr.bf16.mxu0 0
        %329 = vmatpush1.bf16.msra.mxu0 0
        %330 = vmatprep.subr.bf16.mxu0 0
        %331 = vmatpush1.bf16.msra.mxu0 0
        %332 = vmatprep.subr.bf16.mxu0 0
        %333 = vmatpush1.bf16.msra.mxu0 0
        %334 = vmatprep.subr.bf16.mxu0 0
        %335 = vmatpush1.bf16.msra.mxu0 0
        %336 = vmatprep.subr.bf16.mxu0 0
        %337 = vmatpush1.bf16.msra.mxu0 0
        %338 = vmatprep.subr.bf16.mxu0 0
        %339 = vmatpush1.bf16.msra.mxu0 0
        %340 = vmatprep.subr.bf16.mxu0 0
        %341 = vmatpush1.bf16.msra.mxu0 0
        %342 = vmatprep.subr.bf16.mxu0 0
        %343 = vmatpush1.bf16.msra.mxu0 0
        %344 = vmatprep.subr.bf16.mxu0 0
        %345 = vmatpush1.bf16.msra.mxu0 0
        %346 = vmatprep.subr.bf16.mxu0 0
        %347 = vmatpush1.bf16.msra.mxu0 0
        %348 = vmatprep.subr.bf16.mxu0 0
        %349 = vmatpush1.bf16.msra.mxu0 0
        %350 = vmatprep.subr.bf16.mxu0 0
        %351 = vmatpush1.bf16.msra.mxu0 0
        %352 = vmatprep.mubr.bf16.mxu0 0
        %353 = vmatmul.mubr.bf16.gmra.mrb[0].mxu0 %v309
        %v354 = vpop.f32.mrb[0].mxu0
        %v355 = vadd.f32 0.0, %v354
        %v356 = vpop.f32.mrb[0].mxu0
        %v357 = vpop.f32.mrb[0].mxu0
        %v358 = vadd.f32 0.0, %v357
        %v359 = vpop.f32.mrb[0].mxu0
        %360 = vmatprep.mubr.bf16.mxu0 0
        %361 = vmatmul.mubr.bf16.gmra.mrb[0].mxu0 %v312
        %v362 = vpop.f32.mrb[0].mxu0
        %v363 = vadd.f32 0.0, %v362
        %v364 = vpop.f32.mrb[0].mxu0
        %v365 = vpop.f32.mrb[0].mxu0
        %v366 = vadd.f32 0.0, %v365
        %v367 = vpop.f32.mrb[0].mxu0
        %368 = vmatprep.mubr.bf16.mxu0 0
        %369 = vmatmul.mubr.bf16.gmra.mrb[0].mxu0 %v315
        %v370 = vpop.f32.mrb[0].mxu0
        %v371 = vadd.f32 0.0, %v370
        %v372 = vpop.f32.mrb[0].mxu0
        %v373 = vpop.f32.mrb[0].mxu0
        %v374 = vadd.f32 0.0, %v373
        %v375 = vpop.f32.mrb[0].mxu0
        %376 = vmatprep.mubr.bf16.mxu0 0
        %377 = vmatmul.mubr.bf16.gmra.mrb[0].mxu0 %v318
        %v378 = vpop.f32.mrb[0].mxu0
        %v379 = vadd.f32 0.0, %v378
        %v380 = vpop.f32.mrb[0].mxu0
        %v381 = vpop.f32.mrb[0].mxu0
        %v382 = vadd.f32 0.0, %v381
        %v383 = vpop.f32.mrb[0].mxu0
        %384 = vdwg.mxu0
        %v386 = vunpack.c.l.b16 %v257
        %v387 = vpack.c.b16 %v283, %v386
        %v388 = vpack.c.b16 %v285, %v284
        %v389 = vpack.c.b16 %v287, %v286
        %v390 = vpack.c.b16 %v289, %v288
        %v395 = vunpack.c.l.b16 %v266
        %v396 = vunpack.c.l.b16 %v267
        %v397 = vunpack.c.l.b16 %v268
        %v398 = vunpack.c.l.b16 %v269
        %v399 = vpack.c.b16 %v396, %v395
        %v400 = vpack.c.b16 %v398, %v397
        %v404 = vsel %vm307, %v387, 0
        %v407 = vsel %vm307, %v388, 0
        %v410 = vsel %vm307, %v389, 0
        %v413 = vsel %vm307, %v390, 0
        %415 = vmatprep.subr.bf16.mxu0 0
        %416 = vmatpush1.bf16.msra.mxu0 %v399
        %417 = vmatprep.subr.bf16.mxu0 0
        %418 = vmatpush1.bf16.msra.mxu0 %v400
        %419 = vmatprep.subr.bf16.mxu0 0
        %420 = vmatpush1.bf16.msra.mxu0 0
        %421 = vmatprep.subr.bf16.mxu0 0
        %422 = vmatpush1.bf16.msra.mxu0 0
        %423 = vmatprep.subr.bf16.mxu0 0
        %424 = vmatpush1.bf16.msra.mxu0 0
        %425 = vmatprep.subr.bf16.mxu0 0
        %426 = vmatpush1.bf16.msra.mxu0 0
        %427 = vmatprep.subr.bf16.mxu0 0
        %428 = vmatpush1.bf16.msra.mxu0 0
        %429 = vmatprep.subr.bf16.mxu0 0
        %430 = vmatpush1.bf16.msra.mxu0 0
        %431 = vmatprep.subr.bf16.mxu0 0
        %432 = vmatpush1.bf16.msra.mxu0 0
        %433 = vmatprep.subr.bf16.mxu0 0
        %434 = vmatpush1.bf16.msra.mxu0 0
        %435 = vmatprep.subr.bf16.mxu0 0
        %436 = vmatpush1.bf16.msra.mxu0 0
        %437 = vmatprep.subr.bf16.mxu0 0
        %438 = vmatpush1.bf16.msra.mxu0 0
        %439 = vmatprep.subr.bf16.mxu0 0
        %440 = vmatpush1.bf16.msra.mxu0 0
        %441 = vmatprep.subr.bf16.mxu0 0
        %442 = vmatpush1.bf16.msra.mxu0 0
        %443 = vmatprep.subr.bf16.mxu0 0
        %444 = vmatpush1.bf16.msra.mxu0 0
        %445 = vmatprep.subr.bf16.mxu0 0
        %446 = vmatpush1.bf16.msra.mxu0 0
        %447 = vmatprep.mubr.bf16.mxu0 0
        %448 = vmatmul.mubr.bf16.gmra.mrb[0].mxu0 %v404
        %v449 = vpop.f32.mrb[0].mxu0
        %v450 = vadd.f32 %v355, %v449
        %v451 = vpop.f32.mrb[0].mxu0
        %v452 = vpop.f32.mrb[0].mxu0
        %v453 = vadd.f32 %v358, %v452
        %v454 = vpop.f32.mrb[0].mxu0
        %455 = vmatprep.mubr.bf16.mxu0 0
        %456 = vmatmul.mubr.bf16.gmra.mrb[0].mxu0 %v407
        %v457 = vpop.f32.mrb[0].mxu0
        %v458 = vadd.f32 %v363, %v457
        %v459 = vpop.f32.mrb[0].mxu0
        %v460 = vpop.f32.mrb[0].mxu0
        %v461 = vadd.f32 %v366, %v460
        %v462 = vpop.f32.mrb[0].mxu0
        %463 = vmatprep.mubr.bf16.mxu0 0
        %464 = vmatmul.mubr.bf16.gmra.mrb[0].mxu0 %v410
        %v465 = vpop.f32.mrb[0].mxu0
        %v466 = vadd.f32 %v371, %v465
        %v467 = vpop.f32.mrb[0].mxu0
        %v468 = vpop.f32.mrb[0].mxu0
        %v469 = vadd.f32 %v374, %v468
        %v470 = vpop.f32.mrb[0].mxu0
        %471 = vmatprep.mubr.bf16.mxu0 0
        %472 = vmatmul.mubr.bf16.gmra.mrb[0].mxu0 %v413
        %v473 = vpop.f32.mrb[0].mxu0
        %v474 = vadd.f32 %v379, %v473
        %v475 = vpop.f32.mrb[0].mxu0
        %v476 = vpop.f32.mrb[0].mxu0
        %v477 = vadd.f32 %v382, %v476
        %v478 = vpop.f32.mrb[0].mxu0
        %479 = vdwg.mxu0
        %v480 = vadd.f32 %v450, %v453
        %v481 = vadd.f32 %v480, %v458
        %v482 = vadd.f32 %v481, %v461
        %v483 = vadd.f32 %v482, %v466
        %v484 = vadd.f32 %v483, %v469
        %v485 = vadd.f32 %v484, %v474
        %v486 = vadd.f32 %v485, %v477
        %v487 = vrot.slane %v486, 4
        %v488 = vadd.f32 %v486, %v487
        %v489 = vrot.slane %v488, 2
        %v490 = vadd.f32 %v488, %v489
        %v491 = vrot.slane %v490, 1
        %v492 = vadd.f32 %v490, %v491
        %v493 = vmul.f32 %v492, 0.015625
        %v494 = vmul.f32 %v450, %v450
        %v495 = vmul.f32 %v453, %v453
        %v496 = vmul.f32 %v458, %v458
        %v497 = vmul.f32 %v461, %v461
        %v498 = vmul.f32 %v466, %v466
        %v499 = vmul.f32 %v469, %v469
        %v500 = vmul.f32 %v474, %v474
        %v501 = vmul.f32 %v477, %v477
        %v502 = vadd.f32 %v494, %v495
        %v503 = vadd.f32 %v502, %v496
        %v504 = vadd.f32 %v503, %v497
        %v505 = vadd.f32 %v504, %v498
        %v506 = vadd.f32 %v505, %v499
        %v507 = vadd.f32 %v506, %v500
        %v508 = vadd.f32 %v507, %v501
        %v509 = vrot.slane %v508, 4
        %v510 = vadd.f32 %v508, %v509
        %v511 = vrot.slane %v510, 2
        %v512 = vadd.f32 %v510, %v511
        %v513 = vrot.slane %v512, 1
        %v514 = vadd.f32 %v512, %v513
        %v515 = vmul.f32 %v514, 0.015625
        %v516 = vmul.f32 %v493, %v493
        %v517 = vsub.f32 %v515, %v516
        %v518 = vmax.f32 %v517, 0.0
        %v519 = vadd.f32 %v518, 1e-05
        %v520 = vrsqrt.pop %v519
        %v521 = vld [vmem:[#allocation7] sm:$0x1]
        %v522 = vmul.f32 %v520, %v521
        %v523 = vld [vmem:[#allocation8] sm:$0x1]
        %v524 = vmul.f32 %v493, %v522
        %v525 = vsub.f32 %v523, %v524
        %v526 = vlaneseq
        %v527 = vshrl.u32 %v526, 7
        %v528 = vsub.s32 0, %v527
        %v529 = vrot.slane %v522, %v528
        %v530 = vmul.f32 %v450, %v529
        %v531 = vmul.f32 %v453, %v529
        %v532 = vmul.f32 %v458, %v529
        %v533 = vmul.f32 %v461, %v529
        %v534 = vmul.f32 %v466, %v529
        %v535 = vmul.f32 %v469, %v529
        %v536 = vmul.f32 %v474, %v529
        %v537 = vmul.f32 %v477, %v529
        %v539 = vlaneseq
        %v540 = vshrl.u32 %v539, 7
        %v541 = vsub.s32 0, %v540
        %v542 = vrot.slane %v525, %v541
        %v544 = vadd.f32 %v530, %v542
        %v545 = vadd.f32 %v531, %v542
        %v546 = vadd.f32 %v532, %v542
        %v547 = vadd.f32 %v533, %v542
        %v548 = vadd.f32 %v534, %v542
        %v549 = vadd.f32 %v535, %v542
        %v550 = vadd.f32 %v536, %v542
        %v551 = vadd.f32 %v537, %v542
        %v552 = vmul.f32 %v544, 0.01
        %v553 = vmul.f32 %v545, 0.01
        %v554 = vmul.f32 %v546, 0.01
        %v555 = vmul.f32 %v547, 0.01
        %v556 = vmul.f32 %v548, 0.01
        %v557 = vmul.f32 %v549, 0.01
        %v558 = vmul.f32 %v550, 0.01
        %v559 = vmul.f32 %v551, 0.01
        %v560 = vmax.f32 %v544, %v552
        %v561 = vmax.f32 %v545, %v553
        %v562 = vmax.f32 %v546, %v554
        %v563 = vmax.f32 %v547, %v555
        %v564 = vmax.f32 %v548, %v556
        %v565 = vmax.f32 %v549, %v557
        %v566 = vmax.f32 %v550, %v558
        %v567 = vmax.f32 %v551, %v559
        %568 = vst [vmem:[%s255] sm:$0xff] %v560
        %569 = vst [vmem:[%s255 + $0x8] sm:$0xff] %v561
        %570 = vst [vmem:[%s255 + $0x10] sm:$0xff] %v562
        %571 = vst [vmem:[%s255 + $0x18] sm:$0xff] %v563
        %572 = vst [vmem:[%s255 + $0x20] sm:$0xff] %v564
        %573 = vst [vmem:[%s255 + $0x28] sm:$0xff] %v565
        %574 = vst [vmem:[%s255 + $0x30] sm:$0xff] %v566
        %575 = vst [vmem:[%s255 + $0x38] sm:$0xff] %v567
        %s576 = sand.u32 %s120, 1
        %s577 = scalar_lea.sflag [#allocation4], %s576
        %s578 = sand.u32 %s120, 1
        %s579 = smul.addr %s578, 64
        %s580 = scalar_lea.vmem [#allocation10], %s579
        // Predicated region
        $region53: #{conv2d_block_forward.1} parent=35 // pred_check
          %p581 = pneg %p130
        $region54: #{conv2d_block_forward.1} parent=35 // pred_check_branch
          %583 = sbr.rel (%p581) target = $region56
        $region55: #{conv2d_block_forward.1} parent=35 // pred_region
          %s585 = ssub.s32 1024, 1024
          %586 = vsyncadd %s577, %s585
          %s587 = smul.addr %s23, 8
          %s588 = smul.addr %s587, 128
          %s589 = scalar_lea.hbm %s4, %s588
          %s590 = sshll.u32 %s580, 4
          %s591 = int_to_ptr.vmem [resolvable:$true] %s590
          %596 = dma.vmem_to_hbm [thread:$0]  %s591, 1024, %s589, %s577, 128, 128, 8
        $region56: #{conv2d_block_forward.1} parent=35 // pred_fallthru
          _
      $region36: #{conv2d_block_forward.1} parent=5 // pred_fallthru
        _
      %p597 = scmp.le.s32.totalorder 2, %s18
      // Predicated region
      $region57: #{conv2d_block_forward.1} parent=5 // pred_check
        %p598 = pneg %p597
      $region58: #{conv2d_block_forward.1} parent=5 // pred_check_branch
        %600 = sbr.rel (%p598) target = $region60
      $region59: #{conv2d_block_forward.1} parent=5 // pred_region
        %s601 = ssub.s32 %s18, 2
        // Predicated region
        $region61: #{conv2d_block_forward.1} parent=59 // pred_check
          %p602 = pneg %p136
        $region62: #{conv2d_block_forward.1} parent=59 // pred_check_branch
          %604 = sbr.rel (%p602) target = $region64
        $region63: #{conv2d_block_forward.1} parent=59 // pred_region
          %s605 = sand.u32 %s121, 1
          %s606 = scalar_lea.sflag [#allocation4], %s605
          %s607 = sand.u32 %s121, 1
          %s608 = smul.addr %s607, 64
          %s609 = scalar_lea.vmem [#allocation10], %s608
          %610 = dma.done %s606, 1024
        $region64: #{conv2d_block_forward.1} parent=59 // pred_fallthru
          _
      $region60: #{conv2d_block_forward.1} parent=5 // pred_fallthru
        _
    $region6: #{conv2d_block_forward.1} parent=1 // loop_footer
      %s22 = sadd.s32 1, %s18
    $region7: #{conv2d_block_forward.1} parent=1 // loop_footer_branch
      %17 = sbr.rel target = $region3
    $region8: #{conv2d_block_forward.1} parent=1 // loop_exit
      _
    %611 = vsyncpa [#allocation3], 1
    %s612 = scalar_lea.sflag [#allocation3], 1
    %613 = vsyncpa %s612, 1
    %614 = vsyncpa [#allocation6], 1
    %615 = vsyncpa [#allocation9], 1
    %616 = vsyncpa [#allocation4], 1
    %s617 = scalar_lea.sflag [#allocation4], 1
    %618 = vsyncpa %s617, 1

</llo_original>
